<compile_context>
chip_gen: v7x
topology: tpu7x:2x2x1
jax: 0.10.0
libtpu: 0.0.40
codegen_flags: <defaults>
</compile_context>

<pallas_src>
import math

import jax
import jax.numpy as jnp
import numpy as np
from jax.experimental import pallas as pl
from jax.experimental.pallas import tpu as pltpu


def _ffn_kernel(x_ref, w1_ref, b1_ref, w2_ref, b2_ref, w3_ref, b3_ref,
                o_ref, acc_ref):
    # x_ref : (tm, in_dim)      resident across the hidden axis
    # w1_ref: (in_dim, th)      w2_ref: (in_dim, th)
    # b1_ref: (1, th)           b2_ref: (1, th)
    # w3_ref: (th, in_dim)      b3_ref: (1, in_dim)
    # o_ref : (tm, in_dim)      acc_ref: (tm, in_dim) f32 scratch
    k = pl.program_id(1)

    @pl.when(k == 0)
    def _():
        acc_ref[...] = jnp.zeros_like(acc_ref)

    x = x_ref[...]
    g = jnp.dot(x, w1_ref[...], preferred_element_type=jnp.float32)
    g = g + b1_ref[...]
    u = jnp.dot(x, w2_ref[...], preferred_element_type=jnp.float32)
    u = u + b2_ref[...]
    # silu(g) * u in f32 (sigmoid's exp runs on the EUP, hidden under the MXU).
    h = (g * jax.nn.sigmoid(g)) * u
    acc_ref[...] += jnp.dot(h.astype(w3_ref.dtype), w3_ref[...],
                            preferred_element_type=jnp.float32)

    @pl.when(k == pl.num_programs(1) - 1)
    def _():
        o_ref[...] = (acc_ref[...] + b3_ref[...]).astype(o_ref.dtype)


def _round_up(n, m):
    return ((n + m - 1) // m) * m


def _th_candidates(hidden_dim):
    """Valid hidden-tile sizes: multiples of 128 that divide hidden_dim, plus
    the full hidden_dim (always legal)."""
    cands = {hidden_dim}
    d = 128
    while d < hidden_dim:
        if hidden_dim % d == 0:
            cands.add(d)
        d += 128
    return sorted(cands, reverse=True)


def _vmem_estimate(tm, th, in_dim, dsz):
    """Rough double-buffered working-set estimate in bytes."""
    x_b = 2 * tm * in_dim * dsz                       # x (resident, counted 2x)
    w_b = 2 * (2 * in_dim * th + th * in_dim) * dsz   # W1^T, W2^T, W3^T tiles
    b_b = 2 * (2 * th + in_dim) * dsz                 # biases
    o_b = 2 * tm * in_dim * dsz                       # output tile
    acc = tm * in_dim * 4                             # f32 accumulator
    return x_b + w_b + b_b + o_b + acc


def _choose_tiles(n_rows, in_dim, hidden_dim, dsz, tm_req, th_req, budget):
    tm = min(tm_req, _round_up(max(n_rows, 1), 8))
    tm = _round_up(tm, 8)
    cands = _th_candidates(hidden_dim)
    # Largest candidate not exceeding the requested th (fall back to smallest).
    ths = [c for c in cands if c <= max(th_req, 128)] or [cands[-1]]
    th = ths[0]
    # Shrink th, then tm, until the estimated working set fits the budget.
    while _vmem_estimate(tm, th, in_dim, dsz) > budget:
        smaller = [c for c in cands if c < th]
        if smaller:
            th = smaller[0]
        elif tm > 8:
            tm = max(8, _round_up(tm // 2, 8))
        else:
            break  # smallest legal tiles; let the compiler decide.
    return tm, th


def feedforward_forward(x, w1, b1, w2, b2, w3, b3, *,
                        tm=256, th=512,
                        vmem_limit_bytes=48 * 1024 * 1024):
    """SwiGLU FFN forward.

    x : (..., in_dim)
    w1, w2 : (hidden_dim, in_dim)   b1, b2 : (hidden_dim,)   (PyTorch layout)
    w3     : (in_dim, hidden_dim)   b3     : (in_dim,)
    returns same shape as x.
    """
    orig_shape = x.shape
    in_dim = orig_shape[-1]
    hidden_dim = w1.shape[0]
    assert w1.shape == (hidden_dim, in_dim)
    assert w2.shape == (hidden_dim, in_dim)
    assert w3.shape == (in_dim, hidden_dim)

    # Flatten leading dims into a single row axis.
    x2 = x.reshape(-1, in_dim)
    n_rows = x2.shape[0]

    dsz = jnp.dtype(x.dtype).itemsize
    tm, th = _choose_tiles(n_rows, in_dim, hidden_dim, dsz,
                           tm, th, budget=int(0.75 * vmem_limit_bytes))

    # Pad rows up to a multiple of the row tile.
    n_pad = _round_up(max(n_rows, 1), tm)
    if n_pad != n_rows:
        x2 = jnp.pad(x2, ((0, n_pad - n_rows), (0, 0)))

    # One-time layout plumbing outside the kernel: transpose to row-major
    # (K, N) operands and make biases 2-D.
    w1t = w1.T                      # (in_dim, hidden_dim)
    w2t = w2.T                      # (in_dim, hidden_dim)
    w3t = w3.T                      # (hidden_dim, in_dim)
    b1r = b1.reshape(1, hidden_dim)
    b2r = b2.reshape(1, hidden_dim)
    b3r = b3.reshape(1, in_dim)

    grid = (n_pad // tm, hidden_dim // th)

    out2 = pl.pallas_call(
        _ffn_kernel,
        out_shape=jax.ShapeDtypeStruct((n_pad, in_dim), x.dtype),
        grid_spec=pltpu.PrefetchScalarGridSpec(
            num_scalar_prefetch=0,
            grid=grid,
            in_specs=[
                pl.BlockSpec((tm, in_dim), lambda i, k: (i, 0)),   # x (resident over k)
                pl.BlockSpec((in_dim, th), lambda i, k: (0, k)),   # W1^T tile
                pl.BlockSpec((1, th),      lambda i, k: (0, k)),   # b1 tile
                pl.BlockSpec((in_dim, th), lambda i, k: (0, k)),   # W2^T tile
                pl.BlockSpec((1, th),      lambda i, k: (0, k)),   # b2 tile
                pl.BlockSpec((th, in_dim), lambda i, k: (k, 0)),   # W3^T tile
                pl.BlockSpec((1, in_dim),  lambda i, k: (0, 0)),   # b3
            ],
            out_specs=pl.BlockSpec((tm, in_dim), lambda i, k: (i, 0)),
            scratch_shapes=[pltpu.VMEM((tm, in_dim), jnp.float32)],
        ),
        compiler_params=pltpu.CompilerParams(
            dimension_semantics=("parallel", "arbitrary"),
            vmem_limit_bytes=vmem_limit_bytes,
        ),
    )(x2, w1t, b1r, w2t, b2r, w3t, b3r)

    return out2[:n_rows].reshape(orig_shape)


if __name__ == "__main__":
    # Small shapes consistent with FeedForward(in_dim, hidden_dim):
    B, S, in_dim, hidden_dim = 2, 8, 32, 64

    key = jax.random.PRNGKey(0)
    k1, k2, k3, k4, k5, k6, kx = jax.random.split(key, 7)

    # PyTorch-Linear-style uniform init, deterministic.
    s1 = 1.0 / math.sqrt(in_dim)
    s3 = 1.0 / math.sqrt(hidden_dim)
    w1 = jax.random.uniform(k1, (hidden_dim, in_dim), jnp.float32, -s1, s1)
    b1 = jax.random.uniform(k2, (hidden_dim,), jnp.float32, -s1, s1)
    w2 = jax.random.uniform(k3, (hidden_dim, in_dim), jnp.float32, -s1, s1)
    b2 = jax.random.uniform(k4, (hidden_dim,), jnp.float32, -s1, s1)
    w3 = jax.random.uniform(k5, (in_dim, hidden_dim), jnp.float32, -s3, s3)
    b3 = jax.random.uniform(k6, (in_dim,), jnp.float32, -s3, s3)

    x = jax.random.normal(kx, (B, S, in_dim), dtype=jnp.float32)

    out = feedforward_forward(x, w1, b1, w2, b2, w3, b3)
    out = jax.block_until_ready(out)

    # Pure-JAX reference with the same semantics as the PyTorch module:
    # linear3(silu(linear1(x)) * linear2(x))
    h1 = x @ w1.T + b1
    h2 = x @ w2.T + b2
    ref = (jax.nn.silu(h1) * h2) @ w3.T + b3

    np.testing.assert_allclose(np.asarray(out), np.asarray(ref),
                               rtol=2e-5, atol=2e-5)
    assert out.shape == x.shape
    print("KERNEL_OK")
</pallas_src>

<mosaic_0001>
module attributes {stable_mosaic.version = 11 : i64} {
  func.func @_ffn_kernel(%arg0: i32, %arg1: i32, %arg2: memref<16x32xf32, #tpu.memory_space<vmem>>, %arg3: memref<32x64xf32, #tpu.memory_space<vmem>>, %arg4: memref<1x64xf32, #tpu.memory_space<vmem>>, %arg5: memref<32x64xf32, #tpu.memory_space<vmem>>, %arg6: memref<1x64xf32, #tpu.memory_space<vmem>>, %arg7: memref<64x32xf32, #tpu.memory_space<vmem>>, %arg8: memref<1x32xf32, #tpu.memory_space<vmem>>, %arg9: memref<16x32xf32, #tpu.memory_space<vmem>>, %arg10: memref<16x32xf32, #tpu.memory_space<vmem>>) attributes {dimension_semantics = [#tpu.dimension_semantics<parallel>, #tpu.dimension_semantics<arbitrary>], iteration_bounds = array<i64: 1, 1>, scalar_prefetch = 0 : i64, scratch_operands = 1 : i64, tpu.core_type = #tpu.core_type<tc>, window_params = [{transform_indices = @transform_0, window_bounds = array<i64: 16, 32>}, {transform_indices = @transform_1, window_bounds = array<i64: 32, 64>}, {transform_indices = @transform_2, window_bounds = array<i64: 1, 64>}, {transform_indices = @transform_3, window_bounds = array<i64: 32, 64>}, {transform_indices = @transform_4, window_bounds = array<i64: 1, 64>}, {transform_indices = @transform_5, window_bounds = array<i64: 64, 32>}, {pipeline_mode = #tpu.pipeline_mode<synchronous>, transform_indices = @transform_6, window_bounds = array<i64: 1, 32>}, {transform_indices = @transform_7, window_bounds = array<i64: 16, 32>}]} {
    %c0_i32 = arith.constant 0 : i32
    %0 = arith.cmpi eq, %arg1, %c0_i32 : i32
    %1 = arith.extui %0 : i1 to i32
    %c0_i32_0 = arith.constant 0 : i32
    %2 = arith.cmpi ne, %1, %c0_i32_0 : i32
    scf.if %2 {
      %cst_21 = arith.constant 0.000000e+00 : f32
      %29 = vector.broadcast %cst_21 : f32 to vector<16x32xf32>
      %c0_22 = arith.constant 0 : index
      %c0_23 = arith.constant 0 : index
      %30 = vector.load %arg10[%c0_22, %c0_23] : memref<16x32xf32, #tpu.memory_space<vmem>>, vector<16x32xf32>
      tpu.vector_store %arg10[%c0_22, %c0_23], %29 {strides = array<i32>} : memref<16x32xf32, #tpu.memory_space<vmem>>, vector<16x32xf32>,
    } else {
    }
    %c0 = arith.constant 0 : index
    %c0_1 = arith.constant 0 : index
    %3 = vector.load %arg2[%c0, %c0_1] : memref<16x32xf32, #tpu.memory_space<vmem>>, vector<16x32xf32>
    %c0_2 = arith.constant 0 : index
    %c0_3 = arith.constant 0 : index
    %4 = vector.load %arg3[%c0_2, %c0_3] : memref<32x64xf32, #tpu.memory_space<vmem>>, vector<32x64xf32>
    %cst = arith.constant dense<0.000000e+00> : vector<16x64xf32>
    %5 = tpu.matmul %3, %4, %cst {dimension_numbers = #tpu.dot_dimension_numbers<[1], [0], [0], [1], [0, 0, 1, 1], [], []>} : vector<16x32xf32>, vector<32x64xf32>, vector<16x64xf32> -> vector<16x64xf32>
    %c0_4 = arith.constant 0 : index
    %c0_5 = arith.constant 0 : index
    %6 = vector.load %arg4[%c0_4, %c0_5] : memref<1x64xf32, #tpu.memory_space<vmem>>, vector<1x64xf32>
    %7 = vector.broadcast %6 : vector<1x64xf32> to vector<16x64xf32>
    %8 = arith.addf %5, %7 : vector<16x64xf32>
    %c0_6 = arith.constant 0 : index
    %c0_7 = arith.constant 0 : index
    %9 = vector.load %arg5[%c0_6, %c0_7] : memref<32x64xf32, #tpu.memory_space<vmem>>, vector<32x64xf32>
    %cst_8 = arith.constant dense<0.000000e+00> : vector<16x64xf32>
    %10 = tpu.matmul %3, %9, %cst_8 {dimension_numbers = #tpu.dot_dimension_numbers<[1], [0], [0], [1], [0, 0, 1, 1], [], []>} : vector<16x32xf32>, vector<32x64xf32>, vector<16x64xf32> -> vector<16x64xf32>
    %c0_9 = arith.constant 0 : index
    %c0_10 = arith.constant 0 : index
    %11 = vector.load %arg6[%c0_9, %c0_10] : memref<1x64xf32, #tpu.memory_space<vmem>>, vector<1x64xf32>
    %12 = vector.broadcast %11 : vector<1x64xf32> to vector<16x64xf32>
    %13 = arith.addf %10, %12 : vector<16x64xf32>
    %14 = arith.negf %8 : vector<16x64xf32>
    %15 = math.exp %14 : vector<16x64xf32>
    %cst_11 = arith.constant 1.000000e+00 : f32
    %16 = vector.broadcast %cst_11 : f32 to vector<16x64xf32>
    %17 = arith.addf %16, %15 : vector<16x64xf32>
    %18 = arith.divf %16, %17 : vector<16x64xf32>
    %19 = arith.mulf %8, %18 : vector<16x64xf32>
    %20 = arith.mulf %19, %13 : vector<16x64xf32>
    %c0_12 = arith.constant 0 : index
    %c0_13 = arith.constant 0 : index
    %21 = vector.load %arg10[%c0_12, %c0_13] : memref<16x32xf32, #tpu.memory_space<vmem>>, vector<16x32xf32>
    %c0_14 = arith.constant 0 : index
    %c0_15 = arith.constant 0 : index
    %22 = vector.load %arg7[%c0_14, %c0_15] : memref<64x32xf32, #tpu.memory_space<vmem>>, vector<64x32xf32>
    %cst_16 = arith.constant dense<0.000000e+00> : vector<16x32xf32>
    %23 = tpu.matmul %20, %22, %cst_16 {dimension_numbers = #tpu.dot_dimension_numbers<[1], [0], [0], [1], [0, 0, 1, 1], [], []>} : vector<16x64xf32>, vector<64x32xf32>, vector<16x32xf32> -> vector<16x32xf32>
    %24 = arith.addf %21, %23 : vector<16x32xf32>
    %c0_17 = arith.constant 0 : index
    %c0_18 = arith.constant 0 : index
    %25 = vector.load %arg10[%c0_17, %c0_18] : memref<16x32xf32, #tpu.memory_space<vmem>>, vector<16x32xf32>
    tpu.vector_store %arg10[%c0_17, %c0_18], %24 {strides = array<i32>} : memref<16x32xf32, #tpu.memory_space<vmem>>, vector<16x32xf32>,
    %c0_i32_19 = arith.constant 0 : i32
    %26 = arith.cmpi eq, %arg1, %c0_i32_19 : i32
    %27 = arith.extui %26 : i1 to i32
    %c0_i32_20 = arith.constant 0 : i32
    %28 = arith.cmpi ne, %27, %c0_i32_20 : i32
    scf.if %28 {
      %c0_21 = arith.constant 0 : index
      %c0_22 = arith.constant 0 : index
      %29 = vector.load %arg10[%c0_21, %c0_22] : memref<16x32xf32, #tpu.memory_space<vmem>>, vector<16x32xf32>
      %c0_23 = arith.constant 0 : index
      %c0_24 = arith.constant 0 : index
      %30 = vector.load %arg8[%c0_23, %c0_24] : memref<1x32xf32, #tpu.memory_space<vmem>>, vector<1x32xf32>
      %31 = vector.broadcast %30 : vector<1x32xf32> to vector<16x32xf32>
      %32 = arith.addf %29, %31 : vector<16x32xf32>
      %c0_25 = arith.constant 0 : index
      %c0_26 = arith.constant 0 : index
      %33 = vector.load %arg9[%c0_25, %c0_26] : memref<16x32xf32, #tpu.memory_space<vmem>>, vector<16x32xf32>
      tpu.vector_store %arg9[%c0_25, %c0_26], %32 {strides = array<i32>} : memref<16x32xf32, #tpu.memory_space<vmem>>, vector<16x32xf32>,
    } else {
    }
    return
  }
  func.func @transform_0(%arg0: i32, %arg1: i32) -> (i32, i32) {
    %c0_i32 = arith.constant 0 : i32
    %c0_i32_0 = arith.constant 0 : i32
    return %arg0, %c0_i32 : i32, i32
  }
  func.func @transform_1(%arg0: i32, %arg1: i32) -> (i32, i32) {
    %c0_i32 = arith.constant 0 : i32
    %c0_i32_0 = arith.constant 0 : i32
    return %c0_i32, %arg1 : i32, i32
  }
  func.func @transform_2(%arg0: i32, %arg1: i32) -> (i32, i32) {
    %c0_i32 = arith.constant 0 : i32
    %c0_i32_0 = arith.constant 0 : i32
    return %c0_i32, %arg1 : i32, i32
  }
  func.func @transform_3(%arg0: i32, %arg1: i32) -> (i32, i32) {
    %c0_i32 = arith.constant 0 : i32
    %c0_i32_0 = arith.constant 0 : i32
    return %c0_i32, %arg1 : i32, i32
  }
  func.func @transform_4(%arg0: i32, %arg1: i32) -> (i32, i32) {
    %c0_i32 = arith.constant 0 : i32
    %c0_i32_0 = arith.constant 0 : i32
    return %c0_i32, %arg1 : i32, i32
  }
  func.func @transform_5(%arg0: i32, %arg1: i32) -> (i32, i32) {
    %c0_i32 = arith.constant 0 : i32
    %c0_i32_0 = arith.constant 0 : i32
    return %arg1, %c0_i32 : i32, i32
  }
  func.func @transform_6(%arg0: i32, %arg1: i32) -> (i32, i32) {
    %c0_i32 = arith.constant 0 : i32
    %c0_i32_0 = arith.constant 0 : i32
    %c0_i32_1 = arith.constant 0 : i32
    return %c0_i32, %c0_i32_0 : i32, i32
  }
  func.func @transform_7(%arg0: i32, %arg1: i32) -> (i32, i32) {
    %c0_i32 = arith.constant 0 : i32
    %c0_i32_0 = arith.constant 0 : i32
    return %arg0, %c0_i32 : i32, i32
  }
}

</mosaic_0001>

<llo_original>
// kernel: tpu_custom_call.1
$region0: #{tpu_custom_call.1}
  #allocation0 [shape = 'u32[]', space=smem, size = 0x4, offset = 0x4, fixed_abs, tag = 'smem constant byte address 0x4 - core index']
  #allocation1 [shape = 'u32[144,128]{1,0:T(1,128)}', space=vmem, size = 0x12000, scoped, tag = 'internal scratch']
  #allocation2 [shape = 'f32[16,32]{1,0:T(8,128)}', space=vmem, size = 0x2000, scoped, tag = 'scratch operand']
  %s0 = inlined_call_operand.vmem [shape: f32[16,32], index: 0, kind: input, shape index: {}]
  %s1 = inlined_call_operand.vmem [shape: f32[32,64], index: 1, kind: input, shape index: {}]
  %s2 = inlined_call_operand.vmem [shape: f32[1,64], index: 2, kind: input, shape index: {}]
  %s3 = inlined_call_operand.vmem [shape: f32[32,64], index: 3, kind: input, shape index: {}]
  %s4 = inlined_call_operand.vmem [shape: f32[1,64], index: 4, kind: input, shape index: {}]
  %s5 = inlined_call_operand.vmem [shape: f32[64,32], index: 5, kind: input, shape index: {}]
  %s6 = inlined_call_operand.vmem [shape: f32[1,32], index: 6, kind: input, shape index: {}]
  %s7 = inlined_call_operand.hbm [shape: f32[16,32], index: 7, kind: output, shape index: {}]
  %s8 = sld [smem:[#allocation0]]
  $region46: #{tpu_custom_call.1} parent=0
    _
  %s10 = ssub.s32 1, %s8
  %s11 = scalar_select 0, %s10, %s8
  $region1: #{tpu_custom_call.1} parent=0
    #allocation3 [shape = 'u8[8192]{0}', space=vmem, size = 0x2000, scoped, tag = 'output window, operand 0, single buffered']
    #allocation4 [shape = 's32[1]{0}', space=sflag, size = 0x4, scoped, tag = 'scoped memory for tpu_custom_call.1']
    %12 = vsyncpa [#allocation4], 0
    // Predicated region
    $region2: #{tpu_custom_call.1} parent=1 // pred_check
      _
    $region3: #{tpu_custom_call.1} parent=1 // pred_check_branch
      %14 = sbr.rel (0) target = $region5
    $region4: #{tpu_custom_call.1} parent=1 // pred_region
      _
    $region5: #{tpu_custom_call.1} parent=1 // pred_fallthru
      _
    // Predicated region
    $region6: #{tpu_custom_call.1} parent=1 // pred_check
      _
    $region7: #{tpu_custom_call.1} parent=1 // pred_check_branch
      %16 = sbr.rel (0) target = $region9
    $region8: #{tpu_custom_call.1} parent=1 // pred_region
      _
    $region9: #{tpu_custom_call.1} parent=1 // pred_fallthru
      _
    // Predicated region
    $region10: #{tpu_custom_call.1} parent=1 // pred_check
      _
    $region11: #{tpu_custom_call.1} parent=1 // pred_check_branch
      %18 = sbr.rel (0) target = $region13
    $region12: #{tpu_custom_call.1} parent=1 // pred_region
      _
    $region13: #{tpu_custom_call.1} parent=1 // pred_fallthru
      _
    // Predicated region
    $region14: #{tpu_custom_call.1} parent=1 // pred_check
      _
    $region15: #{tpu_custom_call.1} parent=1 // pred_check_branch
      %20 = sbr.rel (0) target = $region17
    $region16: #{tpu_custom_call.1} parent=1 // pred_region
      _
    $region17: #{tpu_custom_call.1} parent=1 // pred_fallthru
      _
    // Predicated region
    $region18: #{tpu_custom_call.1} parent=1 // pred_check
      _
    $region19: #{tpu_custom_call.1} parent=1 // pred_check_branch
      %22 = sbr.rel (0) target = $region21
    $region20: #{tpu_custom_call.1} parent=1 // pred_region
      _
    $region21: #{tpu_custom_call.1} parent=1 // pred_fallthru
      _
    // Predicated region
    $region22: #{tpu_custom_call.1} parent=1 // pred_check
      _
    $region23: #{tpu_custom_call.1} parent=1 // pred_check_branch
      %24 = sbr.rel (0) target = $region25
    $region24: #{tpu_custom_call.1} parent=1 // pred_region
      _
    $region25: #{tpu_custom_call.1} parent=1 // pred_fallthru
      _
    // Predicated region
    $region26: #{tpu_custom_call.1} parent=1 // pred_check
      _
    $region27: #{tpu_custom_call.1} parent=1 // pred_check_branch
      %26 = sbr.rel (0) target = $region29
    $region28: #{tpu_custom_call.1} parent=1 // pred_region
      _
    $region29: #{tpu_custom_call.1} parent=1 // pred_fallthru
      _
    %p27 = scmp.eq.s32.totalorder 0, 0
    // Predicated region
    $region30: #{tpu_custom_call.1} parent=1 // pred_check
      %p28 = pneg %p27
    $region31: #{tpu_custom_call.1} parent=1 // pred_check_branch
      %30 = sbr.rel (%p28) target = $region33
    $region32: #{tpu_custom_call.1} parent=1 // pred_region
      %vm31 = vcmask 261120
      %32 = vst.msk [vmem:[#allocation2] sm:$0xff] %vm31, 0.0
      %33 = vst.msk [vmem:[#allocation2 + $0x8] sm:$0xff] %vm31, 0.0
    $region33: #{tpu_custom_call.1} parent=1 // pred_fallthru
      _
    %v34 = vld [vmem:[%s0] sm:$0xff]
    %v35 = vld [vmem:[%s0 + $0x8] sm:$0xff]
    %v36 = vld [vmem:[%s1] sm:$0xff]
    %v37 = vld [vmem:[%s1 + $0x8] sm:$0xff]
    %v38 = vld [vmem:[%s1 + $0x10] sm:$0xff]
    %v39 = vld [vmem:[%s1 + $0x18] sm:$0xff]
    %v40 = vld [vmem:[%s2] sm:$0x1]
    %v42 = vlaneseq
    %v43 = vshrl.u32 %v42, 7
    %v44 = vsub.s32 0, %v43
    %v45 = vrot.slane %v40, %v44
    %vm47 = vcmask 261120
    %v49 = vsel %vm47, %v34, 0
    %v52 = vsel %vm47, %v35, 0
    %54 = vmatprep.subr.mxu0 0.0
    %55 = vmatpush1.msra.mxu0 %v36
    %56 = vmatprep.subr.mxu0 0.0
    %57 = vmatpush1.msra.mxu0 %v37
    %58 = vmatprep.subr.mxu0 0.0
    %59 = vmatpush1.msra.mxu0 %v38
    %60 = vmatprep.subr.mxu0 0.0
    %61 = vmatpush1.msra.mxu0 %v39
    %62 = vmatprep.subr.mxu0 0.0
    %63 = vmatpush1.msra.mxu0 0.0
    %64 = vmatprep.subr.mxu0 0.0
    %65 = vmatpush1.msra.mxu0 0.0
    %66 = vmatprep.subr.mxu0 0.0
    %67 = vmatpush1.msra.mxu0 0.0
    %68 = vmatprep.subr.mxu0 0.0
    %69 = vmatpush1.msra.mxu0 0.0
    %70 = vmatprep.subr.mxu0 0.0
    %71 = vmatpush1.msra.mxu0 0.0
    %72 = vmatprep.subr.mxu0 0.0
    %73 = vmatpush1.msra.mxu0 0.0
    %74 = vmatprep.subr.mxu0 0.0
    %75 = vmatpush1.msra.mxu0 0.0
    %76 = vmatprep.subr.mxu0 0.0
    %77 = vmatpush1.msra.mxu0 0.0
    %78 = vmatprep.subr.mxu0 0.0
    %79 = vmatpush1.msra.mxu0 0.0
    %80 = vmatprep.subr.mxu0 0.0
    %81 = vmatpush1.msra.mxu0 0.0
    %82 = vmatprep.subr.mxu0 0.0
    %83 = vmatpush1.msra.mxu0 0.0
    %84 = vmatprep.subr.mxu0 0.0
    %85 = vmatpush1.msra.mxu0 0.0
    %86 = vmatprep.subr.mxu0 0.0
    %87 = vmatpush1.msra.mxu0 0.0
    %88 = vmatprep.subr.mxu0 0.0
    %89 = vmatpush1.msra.mxu0 0.0
    %90 = vmatprep.subr.mxu0 0.0
    %91 = vmatpush1.msra.mxu0 0.0
    %92 = vmatprep.subr.mxu0 0.0
    %93 = vmatpush1.msra.mxu0 0.0
    %94 = vmatprep.subr.mxu0 0.0
    %95 = vmatpush1.msra.mxu0 0.0
    %96 = vmatprep.subr.mxu0 0.0
    %97 = vmatpush1.msra.mxu0 0.0
    %98 = vmatprep.subr.mxu0 0.0
    %99 = vmatpush1.msra.mxu0 0.0
    %100 = vmatprep.subr.mxu0 0.0
    %101 = vmatpush1.msra.mxu0 0.0
    %102 = vmatprep.subr.mxu0 0.0
    %103 = vmatpush1.msra.mxu0 0.0
    %104 = vmatprep.subr.mxu0 0.0
    %105 = vmatpush1.msra.mxu0 0.0
    %106 = vmatprep.subr.mxu0 0.0
    %107 = vmatpush1.msra.mxu0 0.0
    %108 = vmatprep.subr.mxu0 0.0
    %109 = vmatpush1.msra.mxu0 0.0
    %110 = vmatprep.subr.mxu0 0.0
    %111 = vmatpush1.msra.mxu0 0.0
    %112 = vmatprep.subr.mxu0 0.0
    %113 = vmatpush1.msra.mxu0 0.0
    %114 = vmatprep.subr.mxu0 0.0
    %115 = vmatpush1.msra.mxu0 0.0
    %116 = vmatprep.subr.mxu0 0.0
    %117 = vmatpush1.msra.mxu0 0.0
    %118 = vmatprep.mubr.f32.mxu0 0.0
    %119 = vmatmul.mubr.f32.gmra.mrb[0].mxu0 %v49
    %v120 = vpop.f32.mrb[0].mxu0
    %v121 = vadd.f32 %v45, %v120
    %v122 = vpop.f32.mrb[0].mxu0
    %123 = vmatprep.mubr.f32.mxu0 0.0
    %124 = vmatmul.mubr.f32.gmra.mrb[0].mxu0 %v52
    %v125 = vpop.f32.mrb[0].mxu0
    %v126 = vadd.f32 %v45, %v125
    %v127 = vpop.f32.mrb[0].mxu0
    %128 = vdwg.mxu0
    %v129 = vld [vmem:[%s3] sm:$0xff]
    %v130 = vld [vmem:[%s3 + $0x8] sm:$0xff]
    %v131 = vld [vmem:[%s3 + $0x10] sm:$0xff]
    %v132 = vld [vmem:[%s3 + $0x18] sm:$0xff]
    %v133 = vld [vmem:[%s4] sm:$0x1]
    %v135 = vlaneseq
    %v136 = vshrl.u32 %v135, 7
    %v137 = vsub.s32 0, %v136
    %v138 = vrot.slane %v133, %v137
    %140 = vmatprep.subr.mxu0 0.0
    %141 = vmatpush1.msra.mxu0 %v129
    %142 = vmatprep.subr.mxu0 0.0
    %143 = vmatpush1.msra.mxu0 %v130
    %144 = vmatprep.subr.mxu0 0.0
    %145 = vmatpush1.msra.mxu0 %v131
    %146 = vmatprep.subr.mxu0 0.0
    %147 = vmatpush1.msra.mxu0 %v132
    %148 = vmatprep.subr.mxu0 0.0
    %149 = vmatpush1.msra.mxu0 0.0
    %150 = vmatprep.subr.mxu0 0.0
    %151 = vmatpush1.msra.mxu0 0.0
    %152 = vmatprep.subr.mxu0 0.0
    %153 = vmatpush1.msra.mxu0 0.0
    %154 = vmatprep.subr.mxu0 0.0
    %155 = vmatpush1.msra.mxu0 0.0
    %156 = vmatprep.subr.mxu0 0.0
    %157 = vmatpush1.msra.mxu0 0.0
    %158 = vmatprep.subr.mxu0 0.0
    %159 = vmatpush1.msra.mxu0 0.0
    %160 = vmatprep.subr.mxu0 0.0
    %161 = vmatpush1.msra.mxu0 0.0
    %162 = vmatprep.subr.mxu0 0.0
    %163 = vmatpush1.msra.mxu0 0.0
    %164 = vmatprep.subr.mxu0 0.0
    %165 = vmatpush1.msra.mxu0 0.0
    %166 = vmatprep.subr.mxu0 0.0
    %167 = vmatpush1.msra.mxu0 0.0
    %168 = vmatprep.subr.mxu0 0.0
    %169 = vmatpush1.msra.mxu0 0.0
    %170 = vmatprep.subr.mxu0 0.0
    %171 = vmatpush1.msra.mxu0 0.0
    %172 = vmatprep.subr.mxu0 0.0
    %173 = vmatpush1.msra.mxu0 0.0
    %174 = vmatprep.subr.mxu0 0.0
    %175 = vmatpush1.msra.mxu0 0.0
    %176 = vmatprep.subr.mxu0 0.0
    %177 = vmatpush1.msra.mxu0 0.0
    %178 = vmatprep.subr.mxu0 0.0
    %179 = vmatpush1.msra.mxu0 0.0
    %180 = vmatprep.subr.mxu0 0.0
    %181 = vmatpush1.msra.mxu0 0.0
    %182 = vmatprep.subr.mxu0 0.0
    %183 = vmatpush1.msra.mxu0 0.0
    %184 = vmatprep.subr.mxu0 0.0
    %185 = vmatpush1.msra.mxu0 0.0
    %186 = vmatprep.subr.mxu0 0.0
    %187 = vmatpush1.msra.mxu0 0.0
    %188 = vmatprep.subr.mxu0 0.0
    %189 = vmatpush1.msra.mxu0 0.0
    %190 = vmatprep.subr.mxu0 0.0
    %191 = vmatpush1.msra.mxu0 0.0
    %192 = vmatprep.subr.mxu0 0.0
    %193 = vmatpush1.msra.mxu0 0.0
    %194 = vmatprep.subr.mxu0 0.0
    %195 = vmatpush1.msra.mxu0 0.0
    %196 = vmatprep.subr.mxu0 0.0
    %197 = vmatpush1.msra.mxu0 0.0
    %198 = vmatprep.subr.mxu0 0.0
    %199 = vmatpush1.msra.mxu0 0.0
    %200 = vmatprep.subr.mxu0 0.0
    %201 = vmatpush1.msra.mxu0 0.0
    %202 = vmatprep.subr.mxu0 0.0
    %203 = vmatpush1.msra.mxu0 0.0
    %204 = vmatprep.mubr.f32.mxu0 0.0
    %205 = vmatmul.mubr.f32.gmra.mrb[0].mxu0 %v49
    %v206 = vpop.f32.mrb[0].mxu0
    %v207 = vadd.f32 %v138, %v206
    %v208 = vpop.f32.mrb[0].mxu0
    %209 = vmatprep.mubr.f32.mxu0 0.0
    %210 = vmatmul.mubr.f32.gmra.mrb[0].mxu0 %v52
    %v211 = vpop.f32.mrb[0].mxu0
    %v212 = vadd.f32 %v138, %v211
    %v213 = vpop.f32.mrb[0].mxu0
    %214 = vdwg.mxu0
    %v215 = vxor.u32 %v121, 2147483648
    %v216 = vxor.u32 %v126, 2147483648
    %v217 = vmul.f32 %v215, 1.442695
    %v218 = vpow.pop %v217
    %v219 = vmul.f32 %v216, 1.442695
    %v220 = vpow.pop %v219
    %v221 = vadd.f32 %v218, 1.0
    %v222 = vadd.f32 %v220, 1.0
    %v223 = vrcp.pop %v221
    %v224 = vmul.f32 1.0, %v223
    %v225 = vrcp.pop %v222
    %v226 = vmul.f32 1.0, %v225
    %v227 = vmul.f32 %v121, %v224
    %v228 = vmul.f32 %v126, %v226
    %v229 = vmul.f32 %v227, %v207
    %v230 = vmul.f32 %v228, %v212
    %v231 = vld [vmem:[#allocation2] sm:$0xff]
    %v232 = vld [vmem:[#allocation2 + $0x8] sm:$0xff]
    %v233 = vld [vmem:[%s5] sm:$0xff]
    %v234 = vld [vmem:[%s5 + $0x8] sm:$0xff]
    %v235 = vld [vmem:[%s5 + $0x10] sm:$0xff]
    %v236 = vld [vmem:[%s5 + $0x18] sm:$0xff]
    %v237 = vld [vmem:[%s5 + $0x20] sm:$0xff]
    %v238 = vld [vmem:[%s5 + $0x28] sm:$0xff]
    %v239 = vld [vmem:[%s5 + $0x30] sm:$0xff]
    %v240 = vld [vmem:[%s5 + $0x38] sm:$0xff]
    %vm241 = vcmask 523264
    %v243 = vsel %vm241, %v229, 0
    %v246 = vsel %vm241, %v230, 0
    %248 = vmatprep.subr.mxu0 0.0
    %249 = vmatpush1.msra.mxu0 %v233
    %250 = vmatprep.subr.mxu0 0.0
    %251 = vmatpush1.msra.mxu0 %v234
    %252 = vmatprep.subr.mxu0 0.0
    %253 = vmatpush1.msra.mxu0 %v235
    %254 = vmatprep.subr.mxu0 0.0
    %255 = vmatpush1.msra.mxu0 %v236
    %256 = vmatprep.subr.mxu0 0.0
    %257 = vmatpush1.msra.mxu0 %v237
    %258 = vmatprep.subr.mxu0 0.0
    %259 = vmatpush1.msra.mxu0 %v238
    %260 = vmatprep.subr.mxu0 0.0
    %261 = vmatpush1.msra.mxu0 %v239
    %262 = vmatprep.subr.mxu0 0.0
    %263 = vmatpush1.msra.mxu0 %v240
    %264 = vmatprep.subr.mxu0 0.0
    %265 = vmatpush1.msra.mxu0 0.0
    %266 = vmatprep.subr.mxu0 0.0
    %267 = vmatpush1.msra.mxu0 0.0
    %268 = vmatprep.subr.mxu0 0.0
    %269 = vmatpush1.msra.mxu0 0.0
    %270 = vmatprep.subr.mxu0 0.0
    %271 = vmatpush1.msra.mxu0 0.0
    %272 = vmatprep.subr.mxu0 0.0
    %273 = vmatpush1.msra.mxu0 0.0
    %274 = vmatprep.subr.mxu0 0.0
    %275 = vmatpush1.msra.mxu0 0.0
    %276 = vmatprep.subr.mxu0 0.0
    %277 = vmatpush1.msra.mxu0 0.0
    %278 = vmatprep.subr.mxu0 0.0
    %279 = vmatpush1.msra.mxu0 0.0
    %280 = vmatprep.subr.mxu0 0.0
    %281 = vmatpush1.msra.mxu0 0.0
    %282 = vmatprep.subr.mxu0 0.0
    %283 = vmatpush1.msra.mxu0 0.0
    %284 = vmatprep.subr.mxu0 0.0
    %285 = vmatpush1.msra.mxu0 0.0
    %286 = vmatprep.subr.mxu0 0.0
    %287 = vmatpush1.msra.mxu0 0.0
    %288 = vmatprep.subr.mxu0 0.0
    %289 = vmatpush1.msra.mxu0 0.0
    %290 = vmatprep.subr.mxu0 0.0
    %291 = vmatpush1.msra.mxu0 0.0
    %292 = vmatprep.subr.mxu0 0.0
    %293 = vmatpush1.msra.mxu0 0.0
    %294 = vmatprep.subr.mxu0 0.0
    %295 = vmatpush1.msra.mxu0 0.0
    %296 = vmatprep.subr.mxu0 0.0
    %297 = vmatpush1.msra.mxu0 0.0
    %298 = vmatprep.subr.mxu0 0.0
    %299 = vmatpush1.msra.mxu0 0.0
    %300 = vmatprep.subr.mxu0 0.0
    %301 = vmatpush1.msra.mxu0 0.0
    %302 = vmatprep.subr.mxu0 0.0
    %303 = vmatpush1.msra.mxu0 0.0
    %304 = vmatprep.subr.mxu0 0.0
    %305 = vmatpush1.msra.mxu0 0.0
    %306 = vmatprep.subr.mxu0 0.0
    %307 = vmatpush1.msra.mxu0 0.0
    %308 = vmatprep.subr.mxu0 0.0
    %309 = vmatpush1.msra.mxu0 0.0
    %310 = vmatprep.subr.mxu0 0.0
    %311 = vmatpush1.msra.mxu0 0.0
    %312 = vmatprep.mubr.f32.mxu0 0.0
    %313 = vmatmul.mubr.f32.gmra.mrb[0].mxu0 %v243
    %v314 = vpop.f32.mrb[0].mxu0
    %v315 = vadd.f32 0.0, %v314
    %v316 = vpop.f32.mrb[0].mxu0
    %317 = vmatprep.mubr.f32.mxu0 0.0
    %318 = vmatmul.mubr.f32.gmra.mrb[0].mxu0 %v246
    %v319 = vpop.f32.mrb[0].mxu0
    %v320 = vadd.f32 0.0, %v319
    %v321 = vpop.f32.mrb[0].mxu0
    %322 = vdwg.mxu0
    %v323 = vadd.f32 %v231, %v315
    %v324 = vadd.f32 %v232, %v320
    %325 = vst.msk [vmem:[#allocation2] sm:$0xff] %vm47, %v323
    %326 = vst.msk [vmem:[#allocation2 + $0x8] sm:$0xff] %vm47, %v324
    // Predicated region
    $region34: #{tpu_custom_call.1} parent=1 // pred_check
      %p327 = pneg %p27
    $region35: #{tpu_custom_call.1} parent=1 // pred_check_branch
      %329 = sbr.rel (%p327) target = $region37
    $region36: #{tpu_custom_call.1} parent=1 // pred_region
      %v330 = vld [vmem:[#allocation2] sm:$0xff]
      %v331 = vld [vmem:[#allocation2 + $0x8] sm:$0xff]
      %v332 = vld [vmem:[%s6] sm:$0x1]
      %v334 = vlaneseq
      %v335 = vshrl.u32 %v334, 7
      %v336 = vsub.s32 0, %v335
      %v337 = vrot.slane %v332, %v336
      %v339 = vadd.f32 %v330, %v337
      %v340 = vadd.f32 %v331, %v337
      %341 = vst.msk [vmem:[#allocation3] sm:$0xff] %vm47, %v339
      %342 = vst.msk [vmem:[#allocation3 + $0x8] sm:$0xff] %vm47, %v340
    $region37: #{tpu_custom_call.1} parent=1 // pred_fallthru
      _
    // Predicated region
    $region38: #{tpu_custom_call.1} parent=1 // pred_check
      _
    $region39: #{tpu_custom_call.1} parent=1 // pred_check_branch
      %344 = sbr.rel (0) target = $region41
    $region40: #{tpu_custom_call.1} parent=1 // pred_region
      %s346 = ssub.s32 256, 256
      %347 = vsyncadd [#allocation4], %s346
      %s348 = sshll.u32 [#allocation3], 4
      %s349 = int_to_ptr.vmem [resolvable:$true] %s348
      %354 = dma.vmem_to_hbm [thread:$0]  %s349, 256, %s7, [#allocation4], 128, 128, 8
    $region41: #{tpu_custom_call.1} parent=1 // pred_fallthru
      _
    // Predicated region
    $region42: #{tpu_custom_call.1} parent=1 // pred_check
      _
    $region43: #{tpu_custom_call.1} parent=1 // pred_check_branch
      %356 = sbr.rel (0) target = $region45
    $region44: #{tpu_custom_call.1} parent=1 // pred_region
      %357 = dma.done [#allocation4], 256
    $region45: #{tpu_custom_call.1} parent=1 // pred_fallthru
      _
    %358 = vsyncpa [#allocation4], 1

</llo_original>
